<compile_context>
chip_gen: v7x
topology: tpu7x:2x2x1
jax: 0.10.0
libtpu: 0.0.40
codegen_flags: <defaults>
</compile_context>

<pallas_src>
import math

import jax
import jax.numpy as jnp
import numpy as np
from jax.experimental import pallas as pl
from jax.experimental.pallas import tpu as pltpu


def build_grid(resolution):
    ranges = [np.linspace(0.0, 1.0, num=res) for res in resolution]
    grid = np.meshgrid(*ranges, sparse=False, indexing="ij")
    grid = np.stack(grid, axis=-1)
    grid = np.reshape(grid, [resolution[0], resolution[1], -1])
    grid = np.expand_dims(grid, axis=0)
    grid = grid.astype(np.float32)
    return np.concatenate([grid, 1.0 - grid], axis=-1)  # (1, H, W, 4)


# --------------------------------------------------------------------------- #
# Kernels
# --------------------------------------------------------------------------- #
def _fused_pos_add_kernel(a_ref, w_ref, b_ref, x_ref, o_ref):
    """Single-step path: pos = A @ W + b computed ONCE, broadcast-add over batch.

    a_ref: (M, K)      repacked positional grid (batch-independent)
    w_ref: (K, N)      repacked Linear weight (block-diagonal in lane-dense mode)
    b_ref: (1, N)      repacked Linear bias
    x_ref: (B, M, N)   flat-repacked inputs (whole batch resident in VMEM)
    o_ref: (B, M, N)
    """
    pos = jnp.dot(a_ref[...], w_ref[...], preferred_element_type=jnp.float32)
    pos = pos + b_ref[...]                                        # (M, N)
    o_ref[...] = (x_ref[...].astype(jnp.float32) + pos[None]).astype(o_ref.dtype)


def _stream_add_kernel(pos_ref, x_ref, o_ref):
    """Tiled path: pure streaming add; pos tile stays resident across batch steps."""
    o_ref[...] = (x_ref[...].astype(jnp.float32) + pos_ref[...]).astype(o_ref.dtype)


# --------------------------------------------------------------------------- #
# Host-side packing / tiling choices (pure layout plumbing on constants)
# --------------------------------------------------------------------------- #
def _lane_dense_group(p, hidden):
    """Pixels-per-row `grp` so N = grp*hidden is a multiple of 128, or None."""
    lane = 128
    grp = lane // math.gcd(hidden, lane)          # smallest grp with grp*hidden % 128 == 0
    if p % grp != 0:
        return None                               # generic fallback (still correct)
    # Optionally widen so the matmul K/N better match the MXU.  Win is modest
    # (the op is HBM-bound) but free.  Keep N <= 512 and at least 8 rows.
    while p % (grp * 2) == 0 and (grp * 2) * hidden <= 512 and p // (grp * 2) >= 8:
        grp *= 2
    return grp


def _row_tile(m, n, itemsize, target_bytes=1 << 20):
    """Largest multiple-of-8 divisor of m whose (rows, n) tile is <= ~1 MiB."""
    if m % 8 != 0:
        return m                                  # full-dim block is always legal
    max_rows = min(m, max(8, (target_bytes // max(n * itemsize, 1)) // 8 * 8))
    for cand in range(max_rows, 7, -8):
        if m % cand == 0:
            return cand
    return m


# --------------------------------------------------------------------------- #
# Wrapper
# --------------------------------------------------------------------------- #
def soft_position_embed(x_nchw, weight, bias, grid_1hw4, *, _force_stream=False):
    """inputs + Linear(grid).view(-1, hidden, H, W)  (PyTorch SoftPositionEmbed).

    x_nchw:    (B, hidden, H, W)
    weight:    (4, hidden)   -- transpose of torch nn.Linear.weight
    bias:      (hidden,)
    grid_1hw4: (1, H, W, 4)
    """
    b_sz, hidden, h, w = x_nchw.shape
    g = grid_1hw4.shape[-1]
    p = h * w
    grid_flat = jnp.asarray(grid_1hw4, jnp.float32).reshape(p, g)
    weight = jnp.asarray(weight, jnp.float32)
    bias = jnp.asarray(bias, jnp.float32)

    grp = _lane_dense_group(p, hidden)
    if grp is not None:
        # Lane-dense flat repacking: each row holds `grp` consecutive pixels.
        m, k, n = p // grp, grp * g, grp * hidden
        a_mat = grid_flat.reshape(m, k)
        w_mat = jnp.kron(jnp.eye(grp, dtype=jnp.float32), weight)   # block-diagonal
        b_row = jnp.tile(bias, grp).reshape(1, n)
    else:
        # Generic packing (any shape; masked stores, but correct).
        m, k, n = p, g, hidden
        a_mat, w_mat, b_row = grid_flat, weight, bias.reshape(1, n)

    # Contiguous flat repack of NCHW inputs; the positional slab is built in the
    # identical flat order, reproducing torch's `.view` add exactly.
    x2d = x_nchw.reshape(b_sz, m, n)
    itemsize = np.dtype(x_nchw.dtype).itemsize

    # Rough VMEM footprint of the single-step fused path: x + out in their dtype
    # plus f32 intermediates / pos.  Stay well inside v5e's 16 MiB default scope.
    fused_bytes = b_sz * m * n * (2 * itemsize + 8) + m * n * 8

    if not _force_stream and fused_bytes <= 8 * 1024 * 1024:
        # ---- small / common case: ONE step, matmul + bias run exactly once ----
        out2d = pl.pallas_call(
            _fused_pos_add_kernel,
            out_shape=jax.ShapeDtypeStruct((b_sz, m, n), x_nchw.dtype),
            input_output_aliases={3: 0},            # x2d -> out (in-place-able add)
        )(a_mat, w_mat, b_row, x2d)
    else:
        # ---- large case: pos precomputed once in XLA; kernel is a streaming add ----
        pos2d = a_mat @ w_mat + b_row               # (m, n) float32, tiny compute
        m_t = _row_tile(m, n, itemsize)
        grid = (m // m_t, b_sz)                     # M-tile axis OUTER, batch INNER
        out2d = pl.pallas_call(
            _stream_add_kernel,
            out_shape=jax.ShapeDtypeStruct((b_sz, m, n), x_nchw.dtype),
            grid=grid,
            in_specs=[
                # pos block index depends only on t -> stays VMEM-resident across
                # the inner batch loop (no re-DMA of pos per batch element).
                pl.BlockSpec((m_t, n), lambda t, b: (t, 0)),
                pl.BlockSpec((1, m_t, n), lambda t, b: (b, t, 0)),
            ],
            out_specs=pl.BlockSpec((1, m_t, n), lambda t, b: (b, t, 0)),
            input_output_aliases={1: 0},            # x2d -> out
            compiler_params=pltpu.CompilerParams(
                dimension_semantics=("parallel", "parallel")),
        )(pos2d, x2d)

    return out2d.reshape(b_sz, hidden, h, w)


def _reference_forward(x_nchw, weight, bias, grid_1hw4):
    """Pure-JAX reference matching the PyTorch forward exactly (flat .view)."""
    b_sz, hidden, h, w = x_nchw.shape
    pos = jnp.einsum("bhwg,gc->bhwc", jnp.asarray(grid_1hw4, jnp.float32),
                     weight) + bias                    # (1, H, W, hidden)
    pos = pos.reshape(1, hidden, h, w)                 # flat reinterpretation
    return x_nchw + pos


if __name__ == "__main__":
    key = jax.random.PRNGKey(0)
    k_x, k_w, k_b = jax.random.split(key, 3)

    batch, hidden, res = 2, 32, 16
    resolution = (res, res)

    grid_np = build_grid(resolution)                   # (1, 16, 16, 4)
    x = jax.random.normal(k_x, (batch, hidden, res, res), jnp.float32)
    bound = 1.0 / np.sqrt(4.0)                         # nn.Linear(4, hidden) init
    weight = jax.random.uniform(k_w, (4, hidden), jnp.float32, -bound, bound)
    bias = jax.random.uniform(k_b, (hidden,), jnp.float32, -bound, bound)
    grid_j = jnp.asarray(grid_np)

    ref = jax.block_until_ready(_reference_forward(x, weight, bias, grid_j))

    # Primary (collapsed single-step) path — the one used at this problem size.
    out = jax.block_until_ready(soft_position_embed(x, weight, bias, grid_j))
    assert out.shape == ref.shape == (batch, hidden, res, res), (out.shape, ref.shape)
    np.testing.assert_allclose(np.asarray(out), np.asarray(ref), rtol=1e-5, atol=1e-5)

    # Also exercise the tiled streaming path (used for large shapes) to make
    # sure both code paths compile and agree numerically.
    out_stream = jax.block_until_ready(
        soft_position_embed(x, weight, bias, grid_j, _force_stream=True))
    np.testing.assert_allclose(np.asarray(out_stream), np.asarray(ref),
                               rtol=1e-5, atol=1e-5)

    print("KERNEL_OK")
</pallas_src>

<mosaic_0001>
module attributes {stable_mosaic.version = 11 : i64} {
  func.func @_fused_pos_add_kernel(%arg0: memref<16x64xf32, #tpu.memory_space<vmem>>, %arg1: memref<64x512xf32, #tpu.memory_space<vmem>>, %arg2: memref<1x512xf32, #tpu.memory_space<vmem>>, %arg3: memref<2x16x512xf32, #tpu.memory_space<vmem>>, %arg4: memref<2x16x512xf32, #tpu.memory_space<vmem>>) attributes {dimension_semantics = [], scalar_prefetch = 0 : i64, scratch_operands = 0 : i64, tpu.core_type = #tpu.core_type<tc>} {
    %c0 = arith.constant 0 : index
    %c0_0 = arith.constant 0 : index
    %0 = vector.load %arg0[%c0, %c0_0] : memref<16x64xf32, #tpu.memory_space<vmem>>, vector<16x64xf32>
    %c0_1 = arith.constant 0 : index
    %c0_2 = arith.constant 0 : index
    %1 = vector.load %arg1[%c0_1, %c0_2] : memref<64x512xf32, #tpu.memory_space<vmem>>, vector<64x512xf32>
    %cst = arith.constant dense<0.000000e+00> : vector<16x512xf32>
    %2 = tpu.matmul %0, %1, %cst {dimension_numbers = #tpu.dot_dimension_numbers<[1], [0], [0], [1], [0, 0, 1, 1], [], []>} : vector<16x64xf32>, vector<64x512xf32>, vector<16x512xf32> -> vector<16x512xf32>
    %c0_3 = arith.constant 0 : index
    %c0_4 = arith.constant 0 : index
    %3 = vector.load %arg2[%c0_3, %c0_4] : memref<1x512xf32, #tpu.memory_space<vmem>>, vector<1x512xf32>
    %4 = vector.broadcast %3 : vector<1x512xf32> to vector<16x512xf32>
    %5 = arith.addf %2, %4 : vector<16x512xf32>
    %c0_5 = arith.constant 0 : index
    %c0_6 = arith.constant 0 : index
    %c0_7 = arith.constant 0 : index
    %6 = vector.load %arg3[%c0_5, %c0_6, %c0_7] : memref<2x16x512xf32, #tpu.memory_space<vmem>>, vector<2x16x512xf32>
    %7 = vector.shape_cast %5 : vector<16x512xf32> to vector<1x16x512xf32>
    %8 = vector.broadcast %7 : vector<1x16x512xf32> to vector<2x16x512xf32>
    %9 = arith.addf %6, %8 : vector<2x16x512xf32>
    %c0_8 = arith.constant 0 : index
    %c0_9 = arith.constant 0 : index
    %c0_10 = arith.constant 0 : index
    %10 = vector.load %arg4[%c0_8, %c0_9, %c0_10] : memref<2x16x512xf32, #tpu.memory_space<vmem>>, vector<2x16x512xf32>
    tpu.vector_store %arg4[%c0_8, %c0_9, %c0_10], %9 {strides = array<i32>} : memref<2x16x512xf32, #tpu.memory_space<vmem>>, vector<2x16x512xf32>,
    return
  }
}

</mosaic_0001>

<llo_original>
// kernel: tpu_custom_call.1
$region0: #{tpu_custom_call.1}
  #allocation0 [shape = 'u32[]', space=smem, size = 0x4, offset = 0x4, fixed_abs, tag = 'smem constant byte address 0x4 - core index']
  #allocation1 [shape = 'u32[144,128]{1,0:T(1,128)}', space=vmem, size = 0x12000, scoped, tag = 'internal scratch']
  %s0 = inlined_call_operand.hbm [shape: f32[16,64], index: 0, kind: input, shape index: {}]
  %s1 = inlined_call_operand.vmem [shape: f32[64,512], index: 1, kind: input, shape index: {}]
  %s2 = inlined_call_operand.vmem [shape: f32[1,512], index: 2, kind: input, shape index: {}]
  %s3 = inlined_call_operand.hbm [shape: f32[2,16,512], index: 3, kind: input, shape index: {}, may-alias: {3,4}]
  %s4 = inlined_call_operand.hbm [shape: f32[2,16,512], index: 4, kind: output, shape index: {}, may-alias: {3,4}]
  %s5 = sld [smem:[#allocation0]]
  $region34: #{tpu_custom_call.1} parent=0
    _
  %s7 = ssub.s32 1, %s5
  %s8 = scalar_select 0, %s7, %s5
  $region1: #{tpu_custom_call.1} parent=0
    #allocation2 [shape = 'u8[8192]{0}', space=vmem, size = 0x2000, scoped, tag = 'input window, operand 0, single buffered']
    #allocation3 [shape = 's32[1]{0}', space=sflag, size = 0x4, scoped, tag = 'scoped memory for tpu_custom_call.1']
    #allocation4 [shape = 's32[1]{0}', space=sflag, size = 0x4, scoped, tag = 'scoped memory for tpu_custom_call.1']
    #allocation5 [shape = 'u8[65536]{0}', space=vmem, size = 0x10000, scoped, tag = 'input window, operand 3, single buffered']
    #allocation6 [shape = 's32[1]{0}', space=sflag, size = 0x4, scoped, tag = 'scoped memory for tpu_custom_call.1']
    #allocation7 [shape = 'u8[65536]{0}', space=vmem, size = 0x10000, scoped, tag = 'output window, operand 0, single buffered']
    %9 = vsyncpa [#allocation3], 0
    %10 = vsyncpa [#allocation6], 0
    %11 = vsyncpa [#allocation4], 0
    // Predicated region
    $region2: #{tpu_custom_call.1} parent=1 // pred_check
      _
    $region3: #{tpu_custom_call.1} parent=1 // pred_check_branch
      %13 = sbr.rel (0) target = $region5
    $region4: #{tpu_custom_call.1} parent=1 // pred_region
      %s15 = ssub.s32 256, 256
      %16 = vsyncadd [#allocation3], %s15
      %s17 = sshll.u32 [#allocation2], 4
      %s18 = int_to_ptr.vmem [resolvable:$true] %s17
      %23 = dma.hbm_to_vmem [thread:$0]  %s0, 256, %s18, [#allocation3], 128, 128, 8
    $region5: #{tpu_custom_call.1} parent=1 // pred_fallthru
      _
    // Predicated region
    $region6: #{tpu_custom_call.1} parent=1 // pred_check
      _
    $region7: #{tpu_custom_call.1} parent=1 // pred_check_branch
      %25 = sbr.rel (0) target = $region9
    $region8: #{tpu_custom_call.1} parent=1 // pred_region
      _
    $region9: #{tpu_custom_call.1} parent=1 // pred_fallthru
      _
    // Predicated region
    $region10: #{tpu_custom_call.1} parent=1 // pred_check
      _
    $region11: #{tpu_custom_call.1} parent=1 // pred_check_branch
      %27 = sbr.rel (0) target = $region13
    $region12: #{tpu_custom_call.1} parent=1 // pred_region
      _
    $region13: #{tpu_custom_call.1} parent=1 // pred_fallthru
      _
    // Predicated region
    $region14: #{tpu_custom_call.1} parent=1 // pred_check
      _
    $region15: #{tpu_custom_call.1} parent=1 // pred_check_branch
      %29 = sbr.rel (0) target = $region17
    $region16: #{tpu_custom_call.1} parent=1 // pred_region
      %s31 = ssub.s32 2048, 2048
      %32 = vsyncadd [#allocation6], %s31
      %s33 = sshll.u32 [#allocation5], 4
      %s34 = int_to_ptr.vmem [resolvable:$true] %s33
      %39 = dma.hbm_to_vmem [thread:$0]  %s3, 2048, %s34, [#allocation6], 512, 512, 32
    $region17: #{tpu_custom_call.1} parent=1 // pred_fallthru
      _
    // Predicated region
    $region18: #{tpu_custom_call.1} parent=1 // pred_check
      _
    $region19: #{tpu_custom_call.1} parent=1 // pred_check_branch
      %41 = sbr.rel (0) target = $region21
    $region20: #{tpu_custom_call.1} parent=1 // pred_region
      %42 = dma.done [#allocation3], 256
    $region21: #{tpu_custom_call.1} parent=1 // pred_fallthru
      _
    // Predicated region
    $region22: #{tpu_custom_call.1} parent=1 // pred_check
      _
    $region23: #{tpu_custom_call.1} parent=1 // pred_check_branch
      %44 = sbr.rel (0) target = $region25
    $region24: #{tpu_custom_call.1} parent=1 // pred_region
      %45 = dma.done [#allocation6], 2048
    $region25: #{tpu_custom_call.1} parent=1 // pred_fallthru
      _
    %v46 = vld [vmem:[#allocation2] sm:$0xff]
    %v47 = vld [vmem:[#allocation2 + $0x8] sm:$0xff]
    %v48 = vld [vmem:[%s1] sm:$0xff]
    %v49 = vld [vmem:[%s1 + $0x8] sm:$0xff]
    %v50 = vld [vmem:[%s1 + $0x10] sm:$0xff]
    %v51 = vld [vmem:[%s1 + $0x18] sm:$0xff]
    %v52 = vld [vmem:[%s1 + $0x20] sm:$0xff]
    %v53 = vld [vmem:[%s1 + $0x28] sm:$0xff]
    %v54 = vld [vmem:[%s1 + $0x30] sm:$0xff]
    %v55 = vld [vmem:[%s1 + $0x38] sm:$0xff]
    %v56 = vld [vmem:[%s1 + $0x40] sm:$0xff]
    %v57 = vld [vmem:[%s1 + $0x48] sm:$0xff]
    %v58 = vld [vmem:[%s1 + $0x50] sm:$0xff]
    %v59 = vld [vmem:[%s1 + $0x58] sm:$0xff]
    %v60 = vld [vmem:[%s1 + $0x60] sm:$0xff]
    %v61 = vld [vmem:[%s1 + $0x68] sm:$0xff]
    %v62 = vld [vmem:[%s1 + $0x70] sm:$0xff]
    %v63 = vld [vmem:[%s1 + $0x78] sm:$0xff]
    %v64 = vld [vmem:[%s1 + $0x80] sm:$0xff]
    %v65 = vld [vmem:[%s1 + $0x88] sm:$0xff]
    %v66 = vld [vmem:[%s1 + $0x90] sm:$0xff]
    %v67 = vld [vmem:[%s1 + $0x98] sm:$0xff]
    %v68 = vld [vmem:[%s1 + $0xa0] sm:$0xff]
    %v69 = vld [vmem:[%s1 + $0xa8] sm:$0xff]
    %v70 = vld [vmem:[%s1 + $0xb0] sm:$0xff]
    %v71 = vld [vmem:[%s1 + $0xb8] sm:$0xff]
    %v72 = vld [vmem:[%s1 + $0xc0] sm:$0xff]
    %v73 = vld [vmem:[%s1 + $0xc8] sm:$0xff]
    %v74 = vld [vmem:[%s1 + $0xd0] sm:$0xff]
    %v75 = vld [vmem:[%s1 + $0xd8] sm:$0xff]
    %v76 = vld [vmem:[%s1 + $0xe0] sm:$0xff]
    %v77 = vld [vmem:[%s1 + $0xe8] sm:$0xff]
    %v78 = vld [vmem:[%s1 + $0xf0] sm:$0xff]
    %v79 = vld [vmem:[%s1 + $0xf8] sm:$0xff]
    %v80 = vld [vmem:[%s2] sm:$0xf]
    %v82 = vlaneseq
    %v83 = vshrl.u32 %v82, 7
    %v84 = vsub.s32 0, %v83
    %v85 = vrot.slane %v80, %v84
    %v86 = vlaneseq
    %v87 = vshrl.u32 %v86, 7
    %v88 = vsub.s32 1, %v87
    %v89 = vrot.slane %v80, %v88
    %v90 = vlaneseq
    %v91 = vshrl.u32 %v90, 7
    %v92 = vsub.s32 2, %v91
    %v93 = vrot.slane %v80, %v92
    %v94 = vlaneseq
    %v95 = vshrl.u32 %v94, 7
    %v96 = vsub.s32 3, %v95
    %v97 = vrot.slane %v80, %v96
    %vm102 = vcmask 523264
    %v104 = vsel %vm102, %v46, 0
    %v107 = vsel %vm102, %v47, 0
    %109 = vmatprep.subr.mxu0 %v49
    %110 = vmatpush1.msra.mxu0 %v48
    %111 = vmatprep.subr.mxu0 %v53
    %112 = vmatpush1.msra.mxu0 %v52
    %113 = vmatprep.subr.mxu0 %v57
    %114 = vmatpush1.msra.mxu0 %v56
    %115 = vmatprep.subr.mxu0 %v61
    %116 = vmatpush1.msra.mxu0 %v60
    %117 = vmatprep.subr.mxu0 %v65
    %118 = vmatpush1.msra.mxu0 %v64
    %119 = vmatprep.subr.mxu0 %v69
    %120 = vmatpush1.msra.mxu0 %v68
    %121 = vmatprep.subr.mxu0 %v73
    %122 = vmatpush1.msra.mxu0 %v72
    %123 = vmatprep.subr.mxu0 %v77
    %124 = vmatpush1.msra.mxu0 %v76
    %125 = vmatprep.subr.mxu0 0.0
    %126 = vmatpush1.msra.mxu0 0.0
    %127 = vmatprep.subr.mxu0 0.0
    %128 = vmatpush1.msra.mxu0 0.0
    %129 = vmatprep.subr.mxu0 0.0
    %130 = vmatpush1.msra.mxu0 0.0
    %131 = vmatprep.subr.mxu0 0.0
    %132 = vmatpush1.msra.mxu0 0.0
    %133 = vmatprep.subr.mxu0 0.0
    %134 = vmatpush1.msra.mxu0 0.0
    %135 = vmatprep.subr.mxu0 0.0
    %136 = vmatpush1.msra.mxu0 0.0
    %137 = vmatprep.subr.mxu0 0.0
    %138 = vmatpush1.msra.mxu0 0.0
    %139 = vmatprep.subr.mxu0 0.0
    %140 = vmatpush1.msra.mxu0 0.0
    %141 = vmatprep.subr.mxu0 0.0
    %142 = vmatpush1.msra.mxu0 0.0
    %143 = vmatprep.subr.mxu0 0.0
    %144 = vmatpush1.msra.mxu0 0.0
    %145 = vmatprep.subr.mxu0 0.0
    %146 = vmatpush1.msra.mxu0 0.0
    %147 = vmatprep.subr.mxu0 0.0
    %148 = vmatpush1.msra.mxu0 0.0
    %149 = vmatprep.subr.mxu0 0.0
    %150 = vmatpush1.msra.mxu0 0.0
    %151 = vmatprep.subr.mxu0 0.0
    %152 = vmatpush1.msra.mxu0 0.0
    %153 = vmatprep.subr.mxu0 0.0
    %154 = vmatpush1.msra.mxu0 0.0
    %155 = vmatprep.subr.mxu0 0.0
    %156 = vmatpush1.msra.mxu0 0.0
    %157 = vmatprep.subr.mxu0 0.0
    %158 = vmatpush1.msra.mxu0 0.0
    %159 = vmatprep.subr.mxu0 0.0
    %160 = vmatpush1.msra.mxu0 0.0
    %161 = vmatprep.subr.mxu0 0.0
    %162 = vmatpush1.msra.mxu0 0.0
    %163 = vmatprep.subr.mxu0 0.0
    %164 = vmatpush1.msra.mxu0 0.0
    %165 = vmatprep.subr.mxu0 0.0
    %166 = vmatpush1.msra.mxu0 0.0
    %167 = vmatprep.subr.mxu0 0.0
    %168 = vmatpush1.msra.mxu0 0.0
    %169 = vmatprep.subr.mxu0 0.0
    %170 = vmatpush1.msra.mxu0 0.0
    %171 = vmatprep.subr.mxu0 0.0
    %172 = vmatpush1.msra.mxu0 0.0
    %173 = vmatprep.mubr.f32.mxu0 0.0
    %174 = vmatmul.mubr.f32.gmra.mrb[0].mxu0 %v104
    %v175 = vpop.f32.mrb[0].mxu0
    %v176 = vadd.f32 %v85, %v175
    %v177 = vpop.f32.mrb[0].mxu0
    %v178 = vadd.f32 %v89, %v177
    %179 = vmatprep.mubr.f32.mxu0 0.0
    %180 = vmatmul.mubr.f32.gmra.mrb[0].mxu0 %v107
    %v181 = vpop.f32.mrb[0].mxu0
    %v182 = vadd.f32 %v85, %v181
    %v183 = vpop.f32.mrb[0].mxu0
    %v184 = vadd.f32 %v89, %v183
    %185 = vdwg.mxu0
    %186 = vmatprep.subr.mxu0 %v51
    %187 = vmatpush1.msra.mxu0 %v50
    %188 = vmatprep.subr.mxu0 %v55
    %189 = vmatpush1.msra.mxu0 %v54
    %190 = vmatprep.subr.mxu0 %v59
    %191 = vmatpush1.msra.mxu0 %v58
    %192 = vmatprep.subr.mxu0 %v63
    %193 = vmatpush1.msra.mxu0 %v62
    %194 = vmatprep.subr.mxu0 %v67
    %195 = vmatpush1.msra.mxu0 %v66
    %196 = vmatprep.subr.mxu0 %v71
    %197 = vmatpush1.msra.mxu0 %v70
    %198 = vmatprep.subr.mxu0 %v75
    %199 = vmatpush1.msra.mxu0 %v74
    %200 = vmatprep.subr.mxu0 %v79
    %201 = vmatpush1.msra.mxu0 %v78
    %202 = vmatprep.subr.mxu0 0.0
    %203 = vmatpush1.msra.mxu0 0.0
    %204 = vmatprep.subr.mxu0 0.0
    %205 = vmatpush1.msra.mxu0 0.0
    %206 = vmatprep.subr.mxu0 0.0
    %207 = vmatpush1.msra.mxu0 0.0
    %208 = vmatprep.subr.mxu0 0.0
    %209 = vmatpush1.msra.mxu0 0.0
    %210 = vmatprep.subr.mxu0 0.0
    %211 = vmatpush1.msra.mxu0 0.0
    %212 = vmatprep.subr.mxu0 0.0
    %213 = vmatpush1.msra.mxu0 0.0
    %214 = vmatprep.subr.mxu0 0.0
    %215 = vmatpush1.msra.mxu0 0.0
    %216 = vmatprep.subr.mxu0 0.0
    %217 = vmatpush1.msra.mxu0 0.0
    %218 = vmatprep.subr.mxu0 0.0
    %219 = vmatpush1.msra.mxu0 0.0
    %220 = vmatprep.subr.mxu0 0.0
    %221 = vmatpush1.msra.mxu0 0.0
    %222 = vmatprep.subr.mxu0 0.0
    %223 = vmatpush1.msra.mxu0 0.0
    %224 = vmatprep.subr.mxu0 0.0
    %225 = vmatpush1.msra.mxu0 0.0
    %226 = vmatprep.subr.mxu0 0.0
    %227 = vmatpush1.msra.mxu0 0.0
    %228 = vmatprep.subr.mxu0 0.0
    %229 = vmatpush1.msra.mxu0 0.0
    %230 = vmatprep.subr.mxu0 0.0
    %231 = vmatpush1.msra.mxu0 0.0
    %232 = vmatprep.subr.mxu0 0.0
    %233 = vmatpush1.msra.mxu0 0.0
    %234 = vmatprep.subr.mxu0 0.0
    %235 = vmatpush1.msra.mxu0 0.0
    %236 = vmatprep.subr.mxu0 0.0
    %237 = vmatpush1.msra.mxu0 0.0
    %238 = vmatprep.subr.mxu0 0.0
    %239 = vmatpush1.msra.mxu0 0.0
    %240 = vmatprep.subr.mxu0 0.0
    %241 = vmatpush1.msra.mxu0 0.0
    %242 = vmatprep.subr.mxu0 0.0
    %243 = vmatpush1.msra.mxu0 0.0
    %244 = vmatprep.subr.mxu0 0.0
    %245 = vmatpush1.msra.mxu0 0.0
    %246 = vmatprep.subr.mxu0 0.0
    %247 = vmatpush1.msra.mxu0 0.0
    %248 = vmatprep.subr.mxu0 0.0
    %249 = vmatpush1.msra.mxu0 0.0
    %250 = vmatprep.mubr.f32.mxu0 0.0
    %251 = vmatmul.mubr.f32.gmra.mrb[0].mxu0 %v104
    %v252 = vpop.f32.mrb[0].mxu0
    %v253 = vadd.f32 %v93, %v252
    %v254 = vpop.f32.mrb[0].mxu0
    %v255 = vadd.f32 %v97, %v254
    %256 = vmatprep.mubr.f32.mxu0 0.0
    %257 = vmatmul.mubr.f32.gmra.mrb[0].mxu0 %v107
    %v258 = vpop.f32.mrb[0].mxu0
    %v259 = vadd.f32 %v93, %v258
    %v260 = vpop.f32.mrb[0].mxu0
    %v261 = vadd.f32 %v97, %v260
    %262 = vdwg.mxu0
    %v263 = vld [vmem:[#allocation5] sm:$0xff]
    %v264 = vld [vmem:[#allocation5 + $0x8] sm:$0xff]
    %v265 = vld [vmem:[#allocation5 + $0x10] sm:$0xff]
    %v266 = vld [vmem:[#allocation5 + $0x18] sm:$0xff]
    %v267 = vld [vmem:[#allocation5 + $0x20] sm:$0xff]
    %v268 = vld [vmem:[#allocation5 + $0x28] sm:$0xff]
    %v269 = vld [vmem:[#allocation5 + $0x30] sm:$0xff]
    %v270 = vld [vmem:[#allocation5 + $0x38] sm:$0xff]
    %v271 = vld [vmem:[#allocation5 + $0x40] sm:$0xff]
    %v272 = vld [vmem:[#allocation5 + $0x48] sm:$0xff]
    %v273 = vld [vmem:[#allocation5 + $0x50] sm:$0xff]
    %v274 = vld [vmem:[#allocation5 + $0x58] sm:$0xff]
    %v275 = vld [vmem:[#allocation5 + $0x60] sm:$0xff]
    %v276 = vld [vmem:[#allocation5 + $0x68] sm:$0xff]
    %v277 = vld [vmem:[#allocation5 + $0x70] sm:$0xff]
    %v278 = vld [vmem:[#allocation5 + $0x78] sm:$0xff]
    %v279 = vadd.f32 %v263, %v176
    %v280 = vadd.f32 %v264, %v178
    %v281 = vadd.f32 %v265, %v253
    %v282 = vadd.f32 %v266, %v255
    %v283 = vadd.f32 %v267, %v182
    %v284 = vadd.f32 %v268, %v184
    %v285 = vadd.f32 %v269, %v259
    %v286 = vadd.f32 %v270, %v261
    %v287 = vadd.f32 %v271, %v176
    %v288 = vadd.f32 %v272, %v178
    %v289 = vadd.f32 %v273, %v253
    %v290 = vadd.f32 %v274, %v255
    %v291 = vadd.f32 %v275, %v182
    %v292 = vadd.f32 %v276, %v184
    %v293 = vadd.f32 %v277, %v259
    %v294 = vadd.f32 %v278, %v261
    %295 = vst [vmem:[#allocation7] sm:$0xff] %v279
    %296 = vst [vmem:[#allocation7 + $0x8] sm:$0xff] %v280
    %297 = vst [vmem:[#allocation7 + $0x10] sm:$0xff] %v281
    %298 = vst [vmem:[#allocation7 + $0x18] sm:$0xff] %v282
    %299 = vst [vmem:[#allocation7 + $0x20] sm:$0xff] %v283
    %300 = vst [vmem:[#allocation7 + $0x28] sm:$0xff] %v284
    %301 = vst [vmem:[#allocation7 + $0x30] sm:$0xff] %v285
    %302 = vst [vmem:[#allocation7 + $0x38] sm:$0xff] %v286
    %303 = vst [vmem:[#allocation7 + $0x40] sm:$0xff] %v287
    %304 = vst [vmem:[#allocation7 + $0x48] sm:$0xff] %v288
    %305 = vst [vmem:[#allocation7 + $0x50] sm:$0xff] %v289
    %306 = vst [vmem:[#allocation7 + $0x58] sm:$0xff] %v290
    %307 = vst [vmem:[#allocation7 + $0x60] sm:$0xff] %v291
    %308 = vst [vmem:[#allocation7 + $0x68] sm:$0xff] %v292
    %309 = vst [vmem:[#allocation7 + $0x70] sm:$0xff] %v293
    %310 = vst [vmem:[#allocation7 + $0x78] sm:$0xff] %v294
    // Predicated region
    $region26: #{tpu_custom_call.1} parent=1 // pred_check
      _
    $region27: #{tpu_custom_call.1} parent=1 // pred_check_branch
      %312 = sbr.rel (0) target = $region29
    $region28: #{tpu_custom_call.1} parent=1 // pred_region
      %s314 = ssub.s32 2048, 2048
      %315 = vsyncadd [#allocation4], %s314
      %s316 = sshll.u32 [#allocation7], 4
      %s317 = int_to_ptr.vmem [resolvable:$true] %s316
      %322 = dma.vmem_to_hbm [thread:$0]  %s317, 2048, %s4, [#allocation4], 512, 512, 32
    $region29: #{tpu_custom_call.1} parent=1 // pred_fallthru
      _
    // Predicated region
    $region30: #{tpu_custom_call.1} parent=1 // pred_check
      _
    $region31: #{tpu_custom_call.1} parent=1 // pred_check_branch
      %324 = sbr.rel (0) target = $region33
    $region32: #{tpu_custom_call.1} parent=1 // pred_region
      %325 = dma.done [#allocation4], 2048
    $region33: #{tpu_custom_call.1} parent=1 // pred_fallthru
      _
    %326 = vsyncpa [#allocation3], 1
    %327 = vsyncpa [#allocation6], 1
    %328 = vsyncpa [#allocation4], 1

</llo_original>
